<compile_context>
chip_gen: v7x
topology: tpu7x:2x2x1
jax: 0.10.0
libtpu: 0.0.40
codegen_flags: <defaults>
</compile_context>

<pallas_src>
import functools
import math

import jax
import jax.numpy as jnp
from jax.experimental import pallas as pl
from jax.experimental.pallas import tpu as pltpu


def _round_up(x: int, m: int) -> int:
    return ((x + m - 1) // m) * m


def _posenc_kernel(x_ref, o_ref, *, scale: float, frequency: int, d: int,
                   out_d: int, out_block_d: int, slab_aligned: bool):
    # x_ref: (TM, D) VMEM tile; o_ref: (TM, out_block_d) VMEM tile.
    # Upcast once (required on v5e: no bf16 VPU/EUP path) and evaluate the
    # transcendentals exactly once per tile.
    x = x_ref[...].astype(jnp.float32)
    s = x * jnp.float32(scale)
    sn = jnp.sin(s)
    cs = jnp.cos(s)
    # Cast to the output dtype BEFORE the F-way replication so the widest live
    # intermediate is in the narrow dtype (halves footprint for bf16 outputs).
    pair = jnp.concatenate([sn, cs], axis=-1).astype(o_ref.dtype)   # (TM, 2*D)

    if slab_aligned:
        # (2*D) % 128 == 0: store each identical sin/cos slab directly with an
        # aligned, unmasked, lane-dense vst; no (TM, 2*F*D) intermediate.
        for k in range(frequency):
            o_ref[:, k * 2 * d:(k + 1) * 2 * d] = pair
    else:
        # Unaligned slab width: assemble one lane-dense row (zero-padded to the
        # 128-lane-aligned block width) and do a single unmasked store.
        parts = [pair] * frequency
        pad = out_block_d - out_d
        if pad:
            parts.append(jnp.zeros((pair.shape[0], pad), dtype=o_ref.dtype))
        o_ref[...] = jnp.concatenate(parts, axis=-1)


def positional_encoder(x, frequency: int, *, max_tile_rows: int = 1024):
    """JAX/Pallas equivalent of PositionalEncoder(frequency).forward(x)."""
    orig_shape = x.shape
    d = orig_shape[-1]
    out_d = 2 * frequency * d
    n = math.prod(orig_shape[:-1]) if len(orig_shape) > 1 else 1

    if n == 0 or d == 0:
        return jnp.zeros(orig_shape[:-1] + (out_d,), dtype=x.dtype)

    x2d = x.reshape(n, d)

    # Late-binding bug in the PyTorch module: all 2F slabs use 2**(F-1).
    scale = (2.0 ** (frequency - 1)) * math.pi

    itemsize = jnp.dtype(x.dtype).itemsize
    sub_align = 8 if itemsize >= 4 else (16 if itemsize == 2 else 32)

    # Output lane layout: direct per-slab stores when 2*D is a lane multiple;
    # otherwise a single store, padding out_d up to a 128-lane multiple so the
    # store stays unmasked (sliced off once afterwards, only in that case).
    slab_aligned = (2 * d) % 128 == 0
    out_block_d = out_d if out_d % 128 == 0 else _round_up(out_d, 128)

    # Generation-aware VMEM sizing (v7x has only 64 MiB physical per TC).
    try:
        vmem_phys = pltpu.get_tpu_info().vmem_capacity_bytes
    except Exception:
        vmem_phys = 64 * 1024 * 1024          # conservative (v7x) default
    vmem_limit = min((vmem_phys * 3) // 4, 96 * 1024 * 1024)
    tile_budget = min(vmem_limit // 2, 28 * 1024 * 1024)

    # Per-row VMEM: double-buffered in/out tiles + in-kernel intermediates
    # (x, s, sn, cs in f32, pair in f32 and in out dtype, and the assembled
    # row for the unaligned path).
    io_row = 2 * itemsize * (d + out_block_d)
    interm_row = 6 * d * 4 + 2 * d * itemsize
    if not slab_aligned:
        interm_row += out_block_d * itemsize
    bytes_per_row = io_row + interm_row

    tm_cap = max(sub_align, (tile_budget // bytes_per_row) // sub_align * sub_align)
    tm = min(_round_up(max_tile_rows, sub_align), tm_cap, _round_up(n, sub_align))
    # Keep >=4 grid steps so the "parallel" axis can be split across v7x's two
    # TensorCores; negligible per-step overhead on single-TC chips.
    tm = min(tm, max(sub_align, _round_up(pl.cdiv(n, 4), sub_align)))

    grid = (pl.cdiv(n, tm),)   # ragged last block is masked by Pallas on store

    kernel = functools.partial(
        _posenc_kernel, scale=scale, frequency=frequency, d=d,
        out_d=out_d, out_block_d=out_block_d, slab_aligned=slab_aligned)

    out2d = pl.pallas_call(
        kernel,
        out_shape=jax.ShapeDtypeStruct((n, out_block_d), x.dtype),
        grid_spec=pltpu.PrefetchScalarGridSpec(
            num_scalar_prefetch=0,
            grid=grid,
            in_specs=[pl.BlockSpec((tm, d), lambda i: (i, 0))],
            out_specs=pl.BlockSpec((tm, out_block_d), lambda i: (i, 0)),
        ),
        compiler_params=pltpu.CompilerParams(
            dimension_semantics=("parallel",),
            vmem_limit_bytes=vmem_limit),
        cost_estimate=pl.CostEstimate(
            flops=n * d,
            transcendentals=2 * n * d,
            bytes_accessed=n * itemsize * (d + out_block_d)),
    )(x2d)

    if out_block_d != out_d:
        out2d = out2d[:, :out_d]
    return out2d.reshape(*orig_shape[:-1], out_d)


def positional_encoder_ref(x, frequency: int):
    """Pure-JAX reference with identical (late-binding) semantics."""
    freq_last = 2.0 ** (frequency - 1)
    outs = []
    for _ in range(frequency):
        outs.append(jnp.sin(freq_last * jnp.pi * x))
        outs.append(jnp.cos(freq_last * jnp.pi * x))
    return jnp.concatenate(outs, axis=-1)


if __name__ == "__main__":
    key = jax.random.PRNGKey(0)

    # 1) small input, out_d = 128 (unaligned slabs, no output padding):
    #    batch=2, points=8, coord dim=16 -> output (2, 8, 128)
    frequency = 4
    x = jax.random.normal(key, (2, 8, 16), dtype=jnp.float32)
    out = jax.block_until_ready(positional_encoder(x, frequency))
    ref = positional_encoder_ref(x, frequency)
    assert out.shape == ref.shape == (2, 8, 2 * frequency * 16)
    assert jnp.allclose(out, ref, atol=2e-5, rtol=2e-5)

    # 2) ragged row count (exercises the cdiv/masked last-block path)
    x2 = jax.random.normal(jax.random.PRNGKey(1), (3, 5, 16), dtype=jnp.float32)
    out2 = jax.block_until_ready(positional_encoder(x2, frequency))
    ref2 = positional_encoder_ref(x2, frequency)
    assert out2.shape == ref2.shape == (3, 5, 2 * frequency * 16)
    assert jnp.allclose(out2, ref2, atol=2e-5, rtol=2e-5)

    # 3) D=64 -> 2*D = 128: exercises the aligned per-slab direct-store path
    x3 = jax.random.normal(jax.random.PRNGKey(2), (2, 16, 64), dtype=jnp.float32)
    out3 = jax.block_until_ready(positional_encoder(x3, 3))
    ref3 = positional_encoder_ref(x3, 3)
    assert out3.shape == ref3.shape == (2, 16, 2 * 3 * 64)
    assert jnp.allclose(out3, ref3, atol=2e-5, rtol=2e-5)

    # 4) NeRF-like D=3, F=2 -> out_d=12: exercises the padded lane-dense store
    x4 = jax.random.normal(jax.random.PRNGKey(3), (4, 7, 3), dtype=jnp.float32)
    out4 = jax.block_until_ready(positional_encoder(x4, 2))
    ref4 = positional_encoder_ref(x4, 2)
    assert out4.shape == ref4.shape == (4, 7, 2 * 2 * 3)
    assert jnp.allclose(out4, ref4, atol=2e-5, rtol=2e-5)

    print("KERNEL_OK")
</pallas_src>

<mosaic_0001>
module attributes {stable_mosaic.version = 11 : i64} {
  func.func @_posenc_kernel(%arg0: i32, %arg1: memref<8x16xf32, #tpu.memory_space<vmem>>, %arg2: memref<8x128xf32, #tpu.memory_space<vmem>>) attributes {dimension_semantics = [#tpu.dimension_semantics<parallel>], iteration_bounds = array<i64: 2>, scalar_prefetch = 0 : i64, scratch_operands = 0 : i64, tpu.core_type = #tpu.core_type<tc>, window_params = [{transform_indices = @transform_0, window_bounds = array<i64: 8, 16>}, {transform_indices = @transform_1, window_bounds = array<i64: 8, 128>}]} {
    %c0 = arith.constant 0 : index
    %c0_0 = arith.constant 0 : index
    %0 = vector.load %arg1[%c0, %c0_0] : memref<8x16xf32, #tpu.memory_space<vmem>>, vector<8x16xf32>
    %cst = arith.constant 25.1327419 : f32
    %1 = vector.broadcast %cst : f32 to vector<8x16xf32>
    %2 = arith.mulf %0, %1 : vector<8x16xf32>
    %3 = math.sin %2 : vector<8x16xf32>
    %4 = math.cos %2 : vector<8x16xf32>
    %5 = tpu.concatenate %3, %4 in 1 : vector<8x16xf32>, vector<8x16xf32> -> vector<8x32xf32>
    %6 = tpu.concatenate %5, %5, %5, %5 in 1 : vector<8x32xf32>, vector<8x32xf32>, vector<8x32xf32>, vector<8x32xf32> -> vector<8x128xf32>
    %c0_1 = arith.constant 0 : index
    %c0_2 = arith.constant 0 : index
    %7 = vector.load %arg2[%c0_1, %c0_2] : memref<8x128xf32, #tpu.memory_space<vmem>>, vector<8x128xf32>
    tpu.vector_store %arg2[%c0_1, %c0_2], %6 {strides = array<i32>} : memref<8x128xf32, #tpu.memory_space<vmem>>, vector<8x128xf32>,
    return
  }
  func.func @transform_0(%arg0: i32) -> (i32, i32) {
    %c0_i32 = arith.constant 0 : i32
    %c0_i32_0 = arith.constant 0 : i32
    return %arg0, %c0_i32 : i32, i32
  }
  func.func @transform_1(%arg0: i32) -> (i32, i32) {
    %c0_i32 = arith.constant 0 : i32
    %c0_i32_0 = arith.constant 0 : i32
    return %arg0, %c0_i32 : i32, i32
  }
}

</mosaic_0001>

<llo_original>
// kernel: tpu_custom_call.1
$region0: #{tpu_custom_call.1}
  #allocation0 [shape = 'u32[]', space=smem, size = 0x4, offset = 0x4, fixed_abs, tag = 'smem constant byte address 0x4 - core index']
  #allocation1 [shape = 'u32[144,128]{1,0:T(1,128)}', space=vmem, size = 0x12000, scoped, tag = 'internal scratch']
  %s0 = inlined_call_operand.hbm [shape: f32[16,16], index: 0, kind: input, shape index: {}]
  %s1 = inlined_call_operand.hbm [shape: f32[16,128], index: 1, kind: output, shape index: {}]
  %s2 = sld [smem:[#allocation0]]
  $region41: #{tpu_custom_call.1} parent=0
    _
  %s4 = ssub.s32 1, %s2
  %s5 = scalar_select 0, %s4, %s2
  $region1: #{tpu_custom_call.1} parent=0
    #allocation2 [shape = 'u8[8192]{0}', space=vmem, size = 0x2000, scoped, tag = 'input window, operand 0']
    #allocation3 [shape = 's32[2]{0}', space=sflag, size = 0x8, scoped, tag = 'scoped memory for tpu_custom_call.1']
    #allocation4 [shape = 's32[2]{0}', space=sflag, size = 0x8, scoped, tag = 'scoped memory for tpu_custom_call.1']
    #allocation5 [shape = 'u8[8192]{0}', space=vmem, size = 0x2000, scoped, tag = 'output window, operand 0']
    %6 = vsyncpa [#allocation3], 0
    %s7 = scalar_lea.sflag [#allocation3], 1
    %8 = vsyncpa %s7, 0
    %9 = vsyncpa [#allocation4], 0
    %s10 = scalar_lea.sflag [#allocation4], 1
    %11 = vsyncpa %s10, 0
    loop: start=0, step=1, limit=4
    $region2: #{tpu_custom_call.1} parent=1 // loop_pre_header
      _
    $region3: #{tpu_custom_call.1} parent=1 // loop_header
      %s13 = sphi 0, %s17
      %p14 = scmp.ge.s32.totalorder %s13, 4
      %s23 = sphi 0, %s25
      %s26 = sphi 0, %s23
      %s27 = sphi 0, %s26
      %s43 = sphi 0, %s27
      %s49 = sphi 0, %s51
      %s52 = sphi 0, %s49
      %s53 = sphi 0, %s52
      %s69 = sphi 0, %s53
    $region4: #{tpu_custom_call.1} parent=1 // loop_header_branch
      %16 = sbr.rel (%p14) target = $region8
    $region5: #{tpu_custom_call.1} parent=1 // loop_body
      %s18 = ssub.s32 %s13, 1
      %s19 = ssub.s32 %s13, 2
      %s20 = sadd.s32 %s13, 1
      %s21 = ssub.s32 %s13, %s20
      %p22 = scmp.eq.s32.totalorder %s21, 0
      %s24 = sadd.s32 %s23, 1
      %s25 = scalar_select %p22, %s23, %s24
      %p28 = pneg %p22
      %p29 = scmp.eq.s32.totalorder %s13, 1
      %p30 = por %p28, %p29
      %p31 = scmp.ne.s32.totalorder %s23, %s26
      %p32 = scmp.eq.s32.totalorder %s13, 0
      %p33 = por %p31, %p32
      %p34 = scmp.ne.s32.totalorder %s23, %s26
      %p35 = scmp.eq.s32.totalorder %s18, 1
      %p36 = por %p34, %p35
      %p37 = scmp.ne.s32.totalorder %s26, %s27
      %p38 = scmp.eq.s32.totalorder %s18, 0
      %p39 = por %p37, %p38
      %p40 = scmp.ne.s32.totalorder %s26, %s27
      %p41 = scmp.eq.s32.totalorder %s19, 1
      %p42 = por %p40, %p41
      %p44 = scmp.ne.s32.totalorder %s27, %s43
      %p45 = scmp.eq.s32.totalorder %s19, 0
      %p46 = por %p44, %p45
      %s47 = ssub.s32 %s13, %s20
      %p48 = scmp.eq.s32.totalorder %s47, 0
      %s50 = sadd.s32 %s49, 1
      %s51 = scalar_select %p48, %s49, %s50
      %p54 = pneg %p48
      %p55 = scmp.eq.s32.totalorder %s13, 1
      %p56 = por %p54, %p55
      %p57 = scmp.ne.s32.totalorder %s49, %s52
      %p58 = scmp.eq.s32.totalorder %s13, 0
      %p59 = por %p57, %p58
      %p60 = scmp.ne.s32.totalorder %s49, %s52
      %p61 = scmp.eq.s32.totalorder %s18, 1
      %p62 = por %p60, %p61
      %p63 = scmp.ne.s32.totalorder %s52, %s53
      %p64 = scmp.eq.s32.totalorder %s18, 0
      %p65 = por %p63, %p64
      %p66 = scmp.ne.s32.totalorder %s52, %s53
      %p67 = scmp.eq.s32.totalorder %s19, 1
      %p68 = por %p66, %p67
      %p70 = scmp.ne.s32.totalorder %s53, %s69
      %p71 = scmp.eq.s32.totalorder %s19, 0
      %p72 = por %p70, %p71
      %p73 = scmp.le.s32.totalorder 1, %s13
      %p74 = scmp.lt.s32.totalorder %s13, 3
      %p75 = pnand %p73, %p74
      %p76 = pneg %p75
      // Predicated region
      $region9: #{tpu_custom_call.1} parent=5 // pred_check
        _
      $region10: #{tpu_custom_call.1} parent=5 // pred_check_branch
        %78 = sbr.rel (%p75) target = $region12
      $region11: #{tpu_custom_call.1} parent=5 // pred_region
        %s79 = ssub.s32 %s13, 1
      $region12: #{tpu_custom_call.1} parent=5 // pred_fallthru
        _
      %p80 = scmp.lt.s32.totalorder %s13, 2
      // Predicated region
      $region13: #{tpu_custom_call.1} parent=5 // pred_check
        %p81 = pneg %p80
      $region14: #{tpu_custom_call.1} parent=5 // pred_check_branch
        %83 = sbr.rel (%p81) target = $region16
      $region15: #{tpu_custom_call.1} parent=5 // pred_region
        // Predicated region
        $region17: #{tpu_custom_call.1} parent=15 // pred_check
          %p84 = pneg %p33
        $region18: #{tpu_custom_call.1} parent=15 // pred_check_branch
          %86 = sbr.rel (%p84) target = $region20
        $region19: #{tpu_custom_call.1} parent=15 // pred_region
          %s87 = sand.u32 %s23, 1
          %s88 = scalar_lea.sflag [#allocation3], %s87
          %s89 = sand.u32 %s23, 1
          %s90 = smul.addr %s89, 8
          %s91 = scalar_lea.vmem [#allocation2], %s90
          %s93 = ssub.s32 128, 128
          %94 = vsyncadd %s88, %s93
          %s95 = smul.addr %s13, 128
          %s96 = scalar_lea.hbm %s0, %s95
          %s98 = sshll.u32 %s91, 4
          %s99 = int_to_ptr.vmem [resolvable:$true] %s98
          %101 = dma.hbm_to_vmem [thread:$0]  %s96, 128, %s99, %s88
        $region20: #{tpu_custom_call.1} parent=15 // pred_fallthru
          _
      $region16: #{tpu_custom_call.1} parent=5 // pred_fallthru
        _
      %p102 = scmp.le.s32.totalorder 1, %s13
      %p103 = scmp.lt.s32.totalorder %s13, 3
      %p104 = pnand %p102, %p103
      %p105 = pneg %p104
      // Predicated region
      $region21: #{tpu_custom_call.1} parent=5 // pred_check
        _
      $region22: #{tpu_custom_call.1} parent=5 // pred_check_branch
        %107 = sbr.rel (%p104) target = $region24
      $region23: #{tpu_custom_call.1} parent=5 // pred_region
        %s108 = ssub.s32 %s13, 1
        %s109 = sand.u32 %s26, 1
        %s110 = scalar_lea.sflag [#allocation3], %s109
        %s111 = sand.u32 %s26, 1
        %s112 = smul.addr %s111, 8
        %s113 = scalar_lea.vmem [#allocation2], %s112
        // Predicated region
        $region25: #{tpu_custom_call.1} parent=23 // pred_check
          %p114 = pneg %p39
        $region26: #{tpu_custom_call.1} parent=23 // pred_check_branch
          %116 = sbr.rel (%p114) target = $region28
        $region27: #{tpu_custom_call.1} parent=23 // pred_region
          %117 = dma.done %s110, 128
        $region28: #{tpu_custom_call.1} parent=23 // pred_fallthru
          _
        %s118 = sand.u32 %s26, 1
        %s119 = scalar_lea.sflag [#allocation3], %s118
        %s120 = sand.u32 %s26, 1
        %s121 = smul.addr %s120, 8
        %s122 = scalar_lea.vmem [#allocation2], %s121
        %p123 = pneg %p39
        %p124 = pneg %p36
        %p125 = pneg %p65
        %p126 = pneg %p62
        %s127 = sand.u32 %s52, 1
        %s128 = scalar_lea.sflag [#allocation4], %s127
        %s129 = sand.u32 %s52, 1
        %s130 = smul.addr %s129, 8
        %s131 = scalar_lea.vmem [#allocation5], %s130
        %v132 = vld [vmem:[%s113] sm:$0xff]
        %v133 = vmul.f32 %v132, 25.132742
        %v134 = vand.u32 2147483647, %v133
        %vm135 = vcmp.le.f32.partialorder %v134, 0.7853982
        %vm136 = vcmp.lt.s32.totalorder %v133, 0
        %v137 = vand.u32 %v133, 2139095040
        %v138 = vshrl.u32 %v137, 23
        %v139 = vsub.s32 %v138, 127
        %v140 = vand.u32 2147483647, %v133
        %v141 = vand.u32 %v140, 8388607
        %v142 = vor.u32 %v141, 8388608
        %v143 = vsub.s32 0, %v142
        %v144 = vadd.s32 %v139, 1
        %vm145 = vcmp.gt.s32.totalorder %v144, 0
        %v146 = vsel %vm145, %v144, 0
        %v147 = vshrl.u32 %v146, 5
        %v148 = vand.u32 %v146, 31
        %v149 = vsub.s32 32, %v148
        %v150 = vshrl.u32 683565275, %v149
        %v151 = vshll.u32 683565275, %v148
        %v152 = vshrl.u32 2475754826, %v149
        %v153 = vor.u32 %v151, %v152
        %v154 = vshll.u32 2475754826, %v148
        %v155 = vshrl.u32 2131351028, %v149
        %v156 = vor.u32 %v154, %v155
        %v157 = vshll.u32 2131351028, %v148
        %v158 = vshrl.u32 2102212464, %v149
        %v159 = vor.u32 %v157, %v158
        %v160 = vshll.u32 2102212464, %v148
        %v161 = vshrl.u32 920167782, %v149
        %v162 = vor.u32 %v160, %v161
        %v163 = vshll.u32 920167782, %v148
        %v164 = vshrl.u32 1326507024, %v149
        %v165 = vor.u32 %v163, %v164
        %vm166 = vcmp.lt.s32.totalorder %v147, 1
        %vm167 = vcmp.lt.s32.totalorder %v147, 2
        %vm168 = vcmp.lt.s32.totalorder %v147, 3
        %vm169 = vcmp.lt.s32.totalorder %v147, 4
        %v170 = vsel %vm166, %v150, %v153
        %v171 = vsel %vm169, %v159, 2102212464
        %v172 = vsel %vm168, %v156, %v171
        %v173 = vsel %vm167, %v170, %v172
        %v174 = vsel %vm166, %v153, %v156
        %v175 = vsel %vm169, %v162, 920167782
        %v176 = vsel %vm168, %v159, %v175
        %v177 = vsel %vm167, %v174, %v176
        %v178 = vsel %vm166, %v156, %v159
        %v179 = vsel %vm169, %v165, 1326507024
        %v180 = vsel %vm168, %v162, %v179
        %v181 = vsel %vm167, %v178, %v180
        %v182 = vshll.u32 %v142, 8
        %v183 = vmul.u32.u64.compose %v182, %v181
        %v184 = vextract.low.u32 %v183
        %v185 = vextract.high.u32 %v183
        %v186 = vmul.u32.u64.compose %v182, %v177
        %v187 = vextract.low.u32 %v186
        %v188 = vextract.high.u32 %v186
        %v189 = vmul.u32 %v182, %v173
        %v190 = vadd.s32 %v185, %v187
        %vm191 = vc.u32 %v185, %v187
        %v192 = vadd.s32 %v188, 1
        %v193 = vsel %vm191, %v192, %v188
        %v194 = vadd.s32 %v189, %v193
        %v195 = vadd.s32 %v194, 536870912
        %v196 = vshrl.u32 %v195, 30
        %v197 = vshll.u32 %v196, 30
        %v198 = vsub.s32 %v194, %v197
        %vm199 = vcmp.lt.s32.totalorder %v198, 0
        %v200 = vsub.s32 0, %v198
        %v201 = vsel %vm199, %v200, %v198
        %v202 = vclz %v201
        %v203 = vsub.s32 %v202, 2
        %vm204 = vcmp.gt.s32.totalorder 0, %v203
        %v205 = vsel %vm204, 0, %v203
        %v206 = vsub.s32 32, %v205
        %v207 = vshll.u32 %v198, %v205
        %v208 = vshrl.u32 %v190, %v206
        %v209 = vor.u32 %v207, %v208
        %v210 = vsub.s32 4294967266, %v205
        %v211 = vadd.s32 %v210, 127
        %v212 = vshll.u32 %v211, 23
        %v213 = vor.u32 4788187, %v212
        %v214 = vand.u32 2147483647, %v213
        %v216 = vcvt.s32.f32 %v209
        %v217 = vmul.f32 %v216, %v214
        %v218 = vxor.u32 %v217, 2147483648
        %v219 = vsel %vm136, %v218, %v217
        %v220 = vsub.s32 4, %v196
        %v221 = vsel %vm136, %v220, %v196
        %v222 = vsel %vm135, %v133, %v219
        %v223 = vsel %vm135, 0, %v221
        %v224 = vcosq.f32.pop %v222
        %v225 = vsinq.f32.pop %v222
        %vm226 = vweird.f32 %v133
        %v227 = vadd.s32 %v223, 3
        %v228 = vand.u32 %v227, 3
        %vm229 = vcmp.lt.s32.totalorder %v228, 2
        %vm230 = vcmp.eq.s32.totalorder %v228, 0
        %v231 = vxor.u32 %v225, 2147483648
        %v232 = vsel %vm230, %v224, %v231
        %vm233 = vcmp.eq.s32.totalorder %v228, 2
        %v234 = vxor.u32 %v224, 2147483648
        %v235 = vsel %vm233, %v234, %v225
        %v236 = vsel %vm229, %v232, %v235
        %v237 = vsel %vm226, nan, %v236
        %v238 = vand.u32 2147483647, %v133
        %vm239 = vcmp.le.f32.partialorder %v238, 0.7853982
        %vm240 = vcmp.lt.s32.totalorder %v133, 0
        %v241 = vand.u32 %v133, 2139095040
        %v242 = vshrl.u32 %v241, 23
        %v243 = vsub.s32 %v242, 127
        %v244 = vand.u32 2147483647, %v133
        %v245 = vand.u32 %v244, 8388607
        %v246 = vor.u32 %v245, 8388608
        %v247 = vsub.s32 0, %v246
        %v248 = vadd.s32 %v243, 1
        %vm249 = vcmp.gt.s32.totalorder %v248, 0
        %v250 = vsel %vm249, %v248, 0
        %v251 = vshrl.u32 %v250, 5
        %v252 = vand.u32 %v250, 31
        %v253 = vsub.s32 32, %v252
        %v254 = vshrl.u32 683565275, %v253
        %v255 = vshll.u32 683565275, %v252
        %v256 = vshrl.u32 2475754826, %v253
        %v257 = vor.u32 %v255, %v256
        %v258 = vshll.u32 2475754826, %v252
        %v259 = vshrl.u32 2131351028, %v253
        %v260 = vor.u32 %v258, %v259
        %v261 = vshll.u32 2131351028, %v252
        %v262 = vshrl.u32 2102212464, %v253
        %v263 = vor.u32 %v261, %v262
        %v264 = vshll.u32 2102212464, %v252
        %v265 = vshrl.u32 920167782, %v253
        %v266 = vor.u32 %v264, %v265
        %v267 = vshll.u32 920167782, %v252
        %v268 = vshrl.u32 1326507024, %v253
        %v269 = vor.u32 %v267, %v268
        %vm270 = vcmp.lt.s32.totalorder %v251, 1
        %vm271 = vcmp.lt.s32.totalorder %v251, 2
        %vm272 = vcmp.lt.s32.totalorder %v251, 3
        %vm273 = vcmp.lt.s32.totalorder %v251, 4
        %v274 = vsel %vm270, %v254, %v257
        %v275 = vsel %vm273, %v263, 2102212464
        %v276 = vsel %vm272, %v260, %v275
        %v277 = vsel %vm271, %v274, %v276
        %v278 = vsel %vm270, %v257, %v260
        %v279 = vsel %vm273, %v266, 920167782
        %v280 = vsel %vm272, %v263, %v279
        %v281 = vsel %vm271, %v278, %v280
        %v282 = vsel %vm270, %v260, %v263
        %v283 = vsel %vm273, %v269, 1326507024
        %v284 = vsel %vm272, %v266, %v283
        %v285 = vsel %vm271, %v282, %v284
        %v286 = vshll.u32 %v246, 8
        %v287 = vmul.u32.u64.compose %v286, %v285
        %v288 = vextract.low.u32 %v287
        %v289 = vextract.high.u32 %v287
        %v290 = vmul.u32.u64.compose %v286, %v281
        %v291 = vextract.low.u32 %v290
        %v292 = vextract.high.u32 %v290
        %v293 = vmul.u32 %v286, %v277
        %v294 = vadd.s32 %v289, %v291
        %vm295 = vc.u32 %v289, %v291
        %v296 = vadd.s32 %v292, 1
        %v297 = vsel %vm295, %v296, %v292
        %v298 = vadd.s32 %v293, %v297
        %v299 = vadd.s32 %v298, 536870912
        %v300 = vshrl.u32 %v299, 30
        %v301 = vshll.u32 %v300, 30
        %v302 = vsub.s32 %v298, %v301
        %vm303 = vcmp.lt.s32.totalorder %v302, 0
        %v304 = vsub.s32 0, %v302
        %v305 = vsel %vm303, %v304, %v302
        %v306 = vclz %v305
        %v307 = vsub.s32 %v306, 2
        %vm308 = vcmp.gt.s32.totalorder 0, %v307
        %v309 = vsel %vm308, 0, %v307
        %v310 = vsub.s32 32, %v309
        %v311 = vshll.u32 %v302, %v309
        %v312 = vshrl.u32 %v294, %v310
        %v313 = vor.u32 %v311, %v312
        %v314 = vsub.s32 4294967266, %v309
        %v315 = vadd.s32 %v314, 127
        %v316 = vshll.u32 %v315, 23
        %v317 = vor.u32 4788187, %v316
        %v318 = vand.u32 2147483647, %v317
        %v320 = vcvt.s32.f32 %v313
        %v321 = vmul.f32 %v320, %v318
        %v322 = vxor.u32 %v321, 2147483648
        %v323 = vsel %vm240, %v322, %v321
        %v324 = vsub.s32 4, %v300
        %v325 = vsel %vm240, %v324, %v300
        %v326 = vsel %vm239, %v133, %v323
        %v327 = vsel %vm239, 0, %v325
        %v328 = vcosq.f32.pop %v326
        %v329 = vsinq.f32.pop %v326
        %vm330 = vweird.f32 %v133
        %v331 = vand.u32 %v327, 3
        %vm332 = vcmp.lt.s32.totalorder %v331, 2
        %vm333 = vcmp.eq.s32.totalorder %v331, 0
        %v334 = vxor.u32 %v329, 2147483648
        %v335 = vsel %vm333, %v328, %v334
        %vm336 = vcmp.eq.s32.totalorder %v331, 2
        %v337 = vxor.u32 %v328, 2147483648
        %v338 = vsel %vm336, %v337, %v329
        %v339 = vsel %vm332, %v335, %v338
        %v340 = vsel %vm330, nan, %v339
        %342 = vrot.lane.b32.xlu0 %v340, 16
        %v343 = vpop.permute.xlu0 %342
        %vm345 = vcmask 130048
        %v346 = vsel %vm345, %v237, %v343
        %348 = vrot.lane.b32.xlu0 %v346, 32
        %v349 = vpop.permute.xlu0 %348
        %351 = vrot.lane.b32.xlu0 %v346, 64
        %v352 = vpop.permute.xlu0 %351
        %354 = vrot.lane.b32.xlu0 %v346, 96
        %v355 = vpop.permute.xlu0 %354
        %vm357 = vcmask 261120
        %v358 = vsel %vm357, %v346, %v349
        %vm359 = vcmask 523264
        %v360 = vsel %vm359, %v358, %v352
        %vm361 = vcmask 785408
        %v362 = vsel %vm361, %v360, %v355
        %363 = vst [vmem:[%s131] sm:$0xff] %v362
        %s364 = sand.u32 %s52, 1
        %s365 = scalar_lea.sflag [#allocation4], %s364
        %s366 = sand.u32 %s52, 1
        %s367 = smul.addr %s366, 8
        %s368 = scalar_lea.vmem [#allocation5], %s367
        // Predicated region
        $region29: #{tpu_custom_call.1} parent=23 // pred_check
          %p369 = pneg %p62
        $region30: #{tpu_custom_call.1} parent=23 // pred_check_branch
          %371 = sbr.rel (%p369) target = $region32
        $region31: #{tpu_custom_call.1} parent=23 // pred_region
          %s373 = ssub.s32 128, 128
          %374 = vsyncadd %s365, %s373
          %s375 = smul.addr %s18, 128
          %s376 = scalar_lea.hbm %s1, %s375
          %s378 = sshll.u32 %s368, 4
          %s379 = int_to_ptr.vmem [resolvable:$true] %s378
          %381 = dma.vmem_to_hbm [thread:$0]  %s379, 128, %s376, %s365
        $region32: #{tpu_custom_call.1} parent=23 // pred_fallthru
          _
      $region24: #{tpu_custom_call.1} parent=5 // pred_fallthru
        _
      %p382 = scmp.le.s32.totalorder 2, %s13
      // Predicated region
      $region33: #{tpu_custom_call.1} parent=5 // pred_check
        %p383 = pneg %p382
      $region34: #{tpu_custom_call.1} parent=5 // pred_check_branch
        %385 = sbr.rel (%p383) target = $region36
      $region35: #{tpu_custom_call.1} parent=5 // pred_region
        %s386 = ssub.s32 %s13, 2
        // Predicated region
        $region37: #{tpu_custom_call.1} parent=35 // pred_check
          %p387 = pneg %p68
        $region38: #{tpu_custom_call.1} parent=35 // pred_check_branch
          %389 = sbr.rel (%p387) target = $region40
        $region39: #{tpu_custom_call.1} parent=35 // pred_region
          %s390 = sand.u32 %s53, 1
          %s391 = scalar_lea.sflag [#allocation4], %s390
          %s392 = sand.u32 %s53, 1
          %s393 = smul.addr %s392, 8
          %s394 = scalar_lea.vmem [#allocation5], %s393
          %395 = dma.done %s391, 128
        $region40: #{tpu_custom_call.1} parent=35 // pred_fallthru
          _
      $region36: #{tpu_custom_call.1} parent=5 // pred_fallthru
        _
    $region6: #{tpu_custom_call.1} parent=1 // loop_footer
      %s17 = sadd.s32 1, %s13
    $region7: #{tpu_custom_call.1} parent=1 // loop_footer_branch
      %12 = sbr.rel target = $region3
    $region8: #{tpu_custom_call.1} parent=1 // loop_exit
      _
    %396 = vsyncpa [#allocation3], 1
    %s397 = scalar_lea.sflag [#allocation3], 1
    %398 = vsyncpa %s397, 1
    %399 = vsyncpa [#allocation4], 1
    %s400 = scalar_lea.sflag [#allocation4], 1
    %401 = vsyncpa %s400, 1

</llo_original>
